<compile_context>
chip_gen: v7x
topology: tpu7x:2x2x1
jax: 0.10.0
libtpu: 0.0.40
codegen_flags: <defaults>
</compile_context>

<pallas_src>
import jax
import jax.numpy as jnp
from jax.experimental import pallas as pl
from jax.experimental.pallas import tpu as pltpu


def _choose_hw_tile(hw, cap=2048):
    """Largest lane tile that divides hw: the full hw if small, else a multiple of 128."""
    if hw <= cap:
        return hw
    best = 0
    t = 128
    while t <= cap:
        if hw % t == 0:
            best = t
        t += 128
    return best if best else hw  # fall back to the monolithic block if no 128-divisor


def channel_attention(xs, params):
    """xs: list of (B, C_i, H, W) NCHW arrays.  params in torch Linear layout, stacked
    over levels: w1 (L, hidden, C), b1 (L, 1, hidden), w2 (L, c_out, hidden),
    b2 (L, 1, c_out).  Returns per-level scales broadcast to x[i].shape."""
    w1, b1, w2, b2 = params
    levels = len(xs)
    B, _, H, W = xs[0].shape
    hw = H * W
    c_per = [int(x.shape[1]) for x in xs]
    C = sum(c_per)
    c_out = int(w2.shape[1])
    assert int(w1.shape[2]) == C, "gate_channels must equal the summed per-level channels"

    # Pre-transpose weights once in the wrapper (no in-kernel XLU transposes).
    w1t = jnp.transpose(w1, (0, 2, 1)).astype(jnp.float32)   # (L, C, hidden)
    w2t = jnp.transpose(w2, (0, 2, 1)).astype(jnp.float32)   # (L, hidden, c_out)
    b1f = b1.astype(jnp.float32)                              # (L, 1, hidden)
    b2f = b2.astype(jnp.float32)                              # (L, 1, c_out)

    # Free (contiguous) reshape of each level's NCHW input; no HBM concat copy.
    xs_flat = [x.reshape(B, ci, hw).astype(jnp.float32) for x, ci in zip(xs, c_per)]

    tile_hw = _choose_hw_tile(hw)
    assert hw % tile_hw == 0
    n_hw_tiles = hw // tile_hw

    def kernel(*refs):
        x_refs = refs[:levels]
        w1_ref, b1_ref, w2_ref, b2_ref = refs[levels:levels + 4]
        out_ref = refs[levels + 4]
        sum_refs = refs[levels + 5:levels + 5 + levels]
        max_refs = refs[levels + 5 + levels:]

        t = pl.program_id(0)
        nt = pl.num_programs(0)

        @pl.when(t == 0)
        def _():
            for sref in sum_refs:
                sref[...] = jnp.zeros_like(sref)
            for mref in max_refs:
                mref[...] = jnp.full_like(mref, -jnp.inf)

        # Partial global pooling for this H*W tile (lane reductions on the XLU),
        # accumulated per level into VMEM scratch.
        for i in range(levels):
            xi = x_refs[i][...]                                    # (B, C_i, tile_hw)
            sum_refs[i][...] = sum_refs[i][...] + jnp.sum(xi, axis=-1)
            max_refs[i][...] = jnp.maximum(max_refs[i][...], jnp.max(xi, axis=-1))

        # Finalize on the last tile: fused avg/max MLPs + running sigmoid gates,
        # one lane-dense store of all levels.
        @pl.when(t == nt - 1)
        def _():
            avg = jnp.concatenate([r[...] for r in sum_refs], axis=-1) * jnp.float32(1.0 / hw)
            mx = jnp.concatenate([r[...] for r in max_refs], axis=-1)
            pooled = jnp.concatenate([avg, mx], axis=0)            # (2B, C): [avg; max]

            cum = jnp.zeros((B, c_out), jnp.float32)
            pieces = []
            for i in range(levels):                                # unrolled (static)
                h = jnp.dot(pooled, w1_ref[i],
                            preferred_element_type=jnp.float32) + b1_ref[i]
                h = jnp.maximum(h, 0.0)
                raw = jnp.dot(h, w2_ref[i],
                              preferred_element_type=jnp.float32) + b2_ref[i]
                cum = cum + raw[:B] + raw[B:]                      # avg branch + max branch
                pieces.append(jax.nn.sigmoid(cum))
            out_ref[...] = jnp.concatenate(pieces, axis=-1)        # (B, levels*c_out)

    in_specs = [pl.BlockSpec((B, ci, tile_hw), lambda t: (0, 0, t)) for ci in c_per]
    in_specs += [
        pl.BlockSpec(w1t.shape, lambda t: (0, 0, 0)),
        pl.BlockSpec(b1f.shape, lambda t: (0, 0, 0)),
        pl.BlockSpec(w2t.shape, lambda t: (0, 0, 0)),
        pl.BlockSpec(b2f.shape, lambda t: (0, 0, 0)),
    ]
    scratch_shapes = ([pltpu.VMEM((B, ci), jnp.float32) for ci in c_per]     # running sums
                      + [pltpu.VMEM((B, ci), jnp.float32) for ci in c_per])  # running maxes

    # Only override the scoped-VMEM default if the tiled pipeline actually needs it
    # (matters for v5e's 16 MiB default / v7x's 64 MiB physical with real feature maps).
    est_bytes = sum(2 * B * ci * tile_hw * 4 for ci in c_per)       # double-buffered x tiles
    est_bytes += 2 * 4 * (w1t.size + b1f.size + w2t.size + b2f.size)
    est_bytes += 2 * B * (levels * c_out) * 4 + 2 * B * C * 4       # output + scratch
    cp_kwargs = dict(dimension_semantics=("arbitrary",))            # sequential reduction axis
    if est_bytes > 12 * 1024 * 1024:
        cp_kwargs["vmem_limit_bytes"] = min(int(est_bytes * 1.5), 64 * 1024 * 1024)
    # TODO(synk): on v7x a second "parallel" grid axis over batch/channel tiles would
    # shard the pooling across both TensorCores; omitted to keep the demo minimal.

    out = pl.pallas_call(
        kernel,
        out_shape=jax.ShapeDtypeStruct((B, levels * c_out), jnp.float32),
        grid_spec=pltpu.PrefetchScalarGridSpec(
            num_scalar_prefetch=0,
            grid=(n_hw_tiles,),
            in_specs=in_specs,
            out_specs=pl.BlockSpec((B, levels * c_out), lambda t: (0, 0)),
            scratch_shapes=scratch_shapes,
        ),
        compiler_params=pltpu.CompilerParams(**cp_kwargs),
    )(*xs_flat, w1t, b1f, w2t, b2f)

    scales = []
    for i in range(levels):
        s = out[:, i * c_out:(i + 1) * c_out].astype(xs[i].dtype)
        # expand_as(x[i]) — lazy broadcast; XLA fuses this into the consumer.
        scales.append(jnp.broadcast_to(s[:, :, None, None], xs[i].shape))
    return scales


def reference(xs, params):
    """Pure-JAX reference mirroring the PyTorch forward."""
    w1, b1, w2, b2 = params
    att = jnp.concatenate(xs, axis=1)
    B, C, _, _ = att.shape
    flat = att.reshape(B, C, -1)
    avg = jnp.mean(flat, axis=-1)
    mx = jnp.max(flat, axis=-1)
    cum = jnp.zeros((B, w2.shape[1]), jnp.float32)
    scales = []
    for i in range(len(xs)):
        def mlp(p, i=i):
            h = jnp.maximum(p @ w1[i].T + b1[i], 0.0)
            return h @ w2[i].T + b2[i]
        cum = cum + mlp(avg) + mlp(mx)
        scales.append(jnp.broadcast_to(
            jax.nn.sigmoid(cum)[:, :, None, None], xs[i].shape))
    return scales


if __name__ == "__main__":
    # Module config: gate_channels=128, levels=2, reduction_ratio=16,
    # pool_types=['avg', 'max'].  Each x[i] has gate_channels // levels channels.
    B, H, W = 2, 16, 16
    gate_channels, levels, reduction_ratio = 128, 2, 16
    hidden = gate_channels // reduction_ratio        # 8
    c_out = gate_channels // levels                  # 64

    key = jax.random.PRNGKey(0)
    k_x0, k_x1, k_w1, k_b1, k_w2, k_b2 = jax.random.split(key, 6)

    xs = [
        jax.random.normal(k_x0, (B, c_out, H, W), jnp.float32),
        jax.random.normal(k_x1, (B, c_out, H, W), jnp.float32),
    ]

    # Deterministic synthetic parameters (stacked over levels).
    # torch Linear weight shapes: (out_features, in_features).
    w1 = 0.05 * jax.random.normal(k_w1, (levels, hidden, gate_channels), jnp.float32)
    b1 = 0.05 * jax.random.normal(k_b1, (levels, 1, hidden), jnp.float32)
    w2 = 0.05 * jax.random.normal(k_w2, (levels, c_out, hidden), jnp.float32)
    b2 = 0.05 * jax.random.normal(k_b2, (levels, 1, c_out), jnp.float32)
    params = (w1, b1, w2, b2)

    scales = channel_attention(xs, params)
    scales = [jax.block_until_ready(s) for s in scales]

    ref = reference(xs, params)
    for s, r in zip(scales, ref):
        assert s.shape == r.shape and s.dtype == r.dtype
        assert jnp.allclose(s, r, atol=1e-5, rtol=1e-5)

    print("KERNEL_OK")
</pallas_src>

<mosaic_0001>
module attributes {stable_mosaic.version = 11 : i64} {
  func.func @kernel(%arg0: i32, %arg1: memref<2x64x256xf32, #tpu.memory_space<vmem>>, %arg2: memref<2x64x256xf32, #tpu.memory_space<vmem>>, %arg3: memref<2x128x8xf32, #tpu.memory_space<vmem>>, %arg4: memref<2x1x8xf32, #tpu.memory_space<vmem>>, %arg5: memref<2x8x64xf32, #tpu.memory_space<vmem>>, %arg6: memref<2x1x64xf32, #tpu.memory_space<vmem>>, %arg7: memref<2x128xf32, #tpu.memory_space<vmem>>, %arg8: memref<2x64xf32, #tpu.memory_space<vmem>>, %arg9: memref<2x64xf32, #tpu.memory_space<vmem>>, %arg10: memref<2x64xf32, #tpu.memory_space<vmem>>, %arg11: memref<2x64xf32, #tpu.memory_space<vmem>>) attributes {dimension_semantics = [#tpu.dimension_semantics<arbitrary>], iteration_bounds = array<i64: 1>, scalar_prefetch = 0 : i64, scratch_operands = 4 : i64, tpu.core_type = #tpu.core_type<tc>, window_params = [{transform_indices = @transform_0, window_bounds = array<i64: 2, 64, 256>}, {transform_indices = @transform_1, window_bounds = array<i64: 2, 64, 256>}, {pipeline_mode = #tpu.pipeline_mode<synchronous>, transform_indices = @transform_2, window_bounds = array<i64: 2, 128, 8>}, {pipeline_mode = #tpu.pipeline_mode<synchronous>, transform_indices = @transform_3, window_bounds = array<i64: 2, 1, 8>}, {pipeline_mode = #tpu.pipeline_mode<synchronous>, transform_indices = @transform_4, window_bounds = array<i64: 2, 8, 64>}, {pipeline_mode = #tpu.pipeline_mode<synchronous>, transform_indices = @transform_5, window_bounds = array<i64: 2, 1, 64>}, {pipeline_mode = #tpu.pipeline_mode<synchronous>, transform_indices = @transform_6, window_bounds = array<i64: 2, 128>}]} {
    %c0_i32 = arith.constant 0 : i32
    %0 = arith.cmpi eq, %arg0, %c0_i32 : i32
    %1 = arith.extui %0 : i1 to i32
    %c0_i32_0 = arith.constant 0 : i32
    %2 = arith.cmpi ne, %1, %c0_i32_0 : i32
    scf.if %2 {
      %cst_27 = arith.constant 0.000000e+00 : f32
      %24 = vector.broadcast %cst_27 : f32 to vector<2x64xf32>
      %c0_28 = arith.constant 0 : index
      %c0_29 = arith.constant 0 : index
      %25 = vector.load %arg8[%c0_28, %c0_29] : memref<2x64xf32, #tpu.memory_space<vmem>>, vector<2x64xf32>
      tpu.vector_store %arg8[%c0_28, %c0_29], %24 {strides = array<i32>} : memref<2x64xf32, #tpu.memory_space<vmem>>, vector<2x64xf32>,
      %cst_30 = arith.constant 0.000000e+00 : f32
      %26 = vector.broadcast %cst_30 : f32 to vector<2x64xf32>
      %c0_31 = arith.constant 0 : index
      %c0_32 = arith.constant 0 : index
      %27 = vector.load %arg9[%c0_31, %c0_32] : memref<2x64xf32, #tpu.memory_space<vmem>>, vector<2x64xf32>
      tpu.vector_store %arg9[%c0_31, %c0_32], %26 {strides = array<i32>} : memref<2x64xf32, #tpu.memory_space<vmem>>, vector<2x64xf32>,
      %cst_33 = arith.constant 0xFF800000 : f32
      %28 = vector.broadcast %cst_33 : f32 to vector<2x64xf32>
      %c0_34 = arith.constant 0 : index
      %c0_35 = arith.constant 0 : index
      %29 = vector.load %arg10[%c0_34, %c0_35] : memref<2x64xf32, #tpu.memory_space<vmem>>, vector<2x64xf32>
      tpu.vector_store %arg10[%c0_34, %c0_35], %28 {strides = array<i32>} : memref<2x64xf32, #tpu.memory_space<vmem>>, vector<2x64xf32>,
      %cst_36 = arith.constant 0xFF800000 : f32
      %30 = vector.broadcast %cst_36 : f32 to vector<2x64xf32>
      %c0_37 = arith.constant 0 : index
      %c0_38 = arith.constant 0 : index
      %31 = vector.load %arg11[%c0_37, %c0_38] : memref<2x64xf32, #tpu.memory_space<vmem>>, vector<2x64xf32>
      tpu.vector_store %arg11[%c0_37, %c0_38], %30 {strides = array<i32>} : memref<2x64xf32, #tpu.memory_space<vmem>>, vector<2x64xf32>,
    } else {
    }
    %c0 = arith.constant 0 : index
    %c0_1 = arith.constant 0 : index
    %c0_2 = arith.constant 0 : index
    %3 = vector.load %arg1[%c0, %c0_1, %c0_2] : memref<2x64x256xf32, #tpu.memory_space<vmem>>, vector<2x64x256xf32>
    %c0_3 = arith.constant 0 : index
    %c0_4 = arith.constant 0 : index
    %4 = vector.load %arg8[%c0_3, %c0_4] : memref<2x64xf32, #tpu.memory_space<vmem>>, vector<2x64xf32>
    %cst = arith.constant dense<0.000000e+00> : vector<2x64xf32>
    %5 = vector.multi_reduction <add>, %3, %cst [2] : vector<2x64x256xf32> to vector<2x64xf32>
    %6 = arith.addf %4, %5 : vector<2x64xf32>
    %c0_5 = arith.constant 0 : index
    %c0_6 = arith.constant 0 : index
    %7 = vector.load %arg8[%c0_5, %c0_6] : memref<2x64xf32, #tpu.memory_space<vmem>>, vector<2x64xf32>
    tpu.vector_store %arg8[%c0_5, %c0_6], %6 {strides = array<i32>} : memref<2x64xf32, #tpu.memory_space<vmem>>, vector<2x64xf32>,
    %c0_7 = arith.constant 0 : index
    %c0_8 = arith.constant 0 : index
    %8 = vector.load %arg10[%c0_7, %c0_8] : memref<2x64xf32, #tpu.memory_space<vmem>>, vector<2x64xf32>
    %cst_9 = arith.constant dense<0xFF800000> : vector<2x64xf32>
    %9 = vector.multi_reduction <maximumf>, %3, %cst_9 [2] : vector<2x64x256xf32> to vector<2x64xf32>
    %10 = arith.maximumf %8, %9 : vector<2x64xf32>
    %c0_10 = arith.constant 0 : index
    %c0_11 = arith.constant 0 : index
    %11 = vector.load %arg10[%c0_10, %c0_11] : memref<2x64xf32, #tpu.memory_space<vmem>>, vector<2x64xf32>
    tpu.vector_store %arg10[%c0_10, %c0_11], %10 {strides = array<i32>} : memref<2x64xf32, #tpu.memory_space<vmem>>, vector<2x64xf32>,
    %c0_12 = arith.constant 0 : index
    %c0_13 = arith.constant 0 : index
    %c0_14 = arith.constant 0 : index
    %12 = vector.load %arg2[%c0_12, %c0_13, %c0_14] : memref<2x64x256xf32, #tpu.memory_space<vmem>>, vector<2x64x256xf32>
    %c0_15 = arith.constant 0 : index
    %c0_16 = arith.constant 0 : index
    %13 = vector.load %arg9[%c0_15, %c0_16] : memref<2x64xf32, #tpu.memory_space<vmem>>, vector<2x64xf32>
    %cst_17 = arith.constant dense<0.000000e+00> : vector<2x64xf32>
    %14 = vector.multi_reduction <add>, %12, %cst_17 [2] : vector<2x64x256xf32> to vector<2x64xf32>
    %15 = arith.addf %13, %14 : vector<2x64xf32>
    %c0_18 = arith.constant 0 : index
    %c0_19 = arith.constant 0 : index
    %16 = vector.load %arg9[%c0_18, %c0_19] : memref<2x64xf32, #tpu.memory_space<vmem>>, vector<2x64xf32>
    tpu.vector_store %arg9[%c0_18, %c0_19], %15 {strides = array<i32>} : memref<2x64xf32, #tpu.memory_space<vmem>>, vector<2x64xf32>,
    %c0_20 = arith.constant 0 : index
    %c0_21 = arith.constant 0 : index
    %17 = vector.load %arg11[%c0_20, %c0_21] : memref<2x64xf32, #tpu.memory_space<vmem>>, vector<2x64xf32>
    %cst_22 = arith.constant dense<0xFF800000> : vector<2x64xf32>
    %18 = vector.multi_reduction <maximumf>, %12, %cst_22 [2] : vector<2x64x256xf32> to vector<2x64xf32>
    %19 = arith.maximumf %17, %18 : vector<2x64xf32>
    %c0_23 = arith.constant 0 : index
    %c0_24 = arith.constant 0 : index
    %20 = vector.load %arg11[%c0_23, %c0_24] : memref<2x64xf32, #tpu.memory_space<vmem>>, vector<2x64xf32>
    tpu.vector_store %arg11[%c0_23, %c0_24], %19 {strides = array<i32>} : memref<2x64xf32, #tpu.memory_space<vmem>>, vector<2x64xf32>,
    %c0_i32_25 = arith.constant 0 : i32
    %21 = arith.cmpi eq, %arg0, %c0_i32_25 : i32
    %22 = arith.extui %21 : i1 to i32
    %c0_i32_26 = arith.constant 0 : i32
    %23 = arith.cmpi ne, %22, %c0_i32_26 : i32
    scf.if %23 {
      %c0_27 = arith.constant 0 : index
      %c0_28 = arith.constant 0 : index
      %24 = vector.load %arg8[%c0_27, %c0_28] : memref<2x64xf32, #tpu.memory_space<vmem>>, vector<2x64xf32>
      %c0_29 = arith.constant 0 : index
      %c0_30 = arith.constant 0 : index
      %25 = vector.load %arg9[%c0_29, %c0_30] : memref<2x64xf32, #tpu.memory_space<vmem>>, vector<2x64xf32>
      %26 = tpu.concatenate %24, %25 in 1 : vector<2x64xf32>, vector<2x64xf32> -> vector<2x128xf32>
      %cst_31 = arith.constant 3.906250e-03 : f32
      %27 = vector.broadcast %cst_31 : f32 to vector<2x128xf32>
      %28 = arith.mulf %26, %27 : vector<2x128xf32>
      %c0_32 = arith.constant 0 : index
      %c0_33 = arith.constant 0 : index
      %29 = vector.load %arg10[%c0_32, %c0_33] : memref<2x64xf32, #tpu.memory_space<vmem>>, vector<2x64xf32>
      %c0_34 = arith.constant 0 : index
      %c0_35 = arith.constant 0 : index
      %30 = vector.load %arg11[%c0_34, %c0_35] : memref<2x64xf32, #tpu.memory_space<vmem>>, vector<2x64xf32>
      %31 = tpu.concatenate %29, %30 in 1 : vector<2x64xf32>, vector<2x64xf32> -> vector<2x128xf32>
      %32 = tpu.concatenate %28, %31 in 0 : vector<2x128xf32>, vector<2x128xf32> -> vector<4x128xf32>
      %cst_36 = arith.constant 0.000000e+00 : f32
      %33 = vector.broadcast %cst_36 : f32 to vector<2x64xf32>
      %c0_37 = arith.constant 0 : index
      %c0_38 = arith.constant 0 : index
      %c0_39 = arith.constant 0 : index
      %34 = vector.load %arg3[%c0_37, %c0_38, %c0_39] : memref<2x128x8xf32, #tpu.memory_space<vmem>>, vector<1x128x8xf32>
      %35 = vector.shape_cast %34 : vector<1x128x8xf32> to vector<128x8xf32>
      %cst_40 = arith.constant dense<0.000000e+00> : vector<4x8xf32>
      %36 = tpu.matmul %32, %35, %cst_40 {dimension_numbers = #tpu.dot_dimension_numbers<[1], [0], [0], [1], [0, 0, 1, 1], [], []>} : vector<4x128xf32>, vector<128x8xf32>, vector<4x8xf32> -> vector<4x8xf32>
      %c0_41 = arith.constant 0 : index
      %c0_42 = arith.constant 0 : index
      %c0_43 = arith.constant 0 : index
      %37 = vector.load %arg4[%c0_41, %c0_42, %c0_43] : memref<2x1x8xf32, #tpu.memory_space<vmem>>, vector<1x1x8xf32>
      %38 = vector.shape_cast %37 : vector<1x1x8xf32> to vector<1x8xf32>
      %39 = vector.broadcast %38 : vector<1x8xf32> to vector<4x8xf32>
      %40 = arith.addf %36, %39 : vector<4x8xf32>
      %cst_44 = arith.constant 0.000000e+00 : f32
      %41 = vector.broadcast %cst_44 : f32 to vector<4x8xf32>
      %42 = arith.maximumf %40, %41 : vector<4x8xf32>
      %c0_45 = arith.constant 0 : index
      %c0_46 = arith.constant 0 : index
      %c0_47 = arith.constant 0 : index
      %43 = vector.load %arg5[%c0_45, %c0_46, %c0_47] : memref<2x8x64xf32, #tpu.memory_space<vmem>>, vector<1x8x64xf32>
      %44 = vector.shape_cast %43 : vector<1x8x64xf32> to vector<8x64xf32>
      %cst_48 = arith.constant dense<0.000000e+00> : vector<4x64xf32>
      %45 = tpu.matmul %42, %44, %cst_48 {dimension_numbers = #tpu.dot_dimension_numbers<[1], [0], [0], [1], [0, 0, 1, 1], [], []>} : vector<4x8xf32>, vector<8x64xf32>, vector<4x64xf32> -> vector<4x64xf32>
      %c0_49 = arith.constant 0 : index
      %c0_50 = arith.constant 0 : index
      %c0_51 = arith.constant 0 : index
      %46 = vector.load %arg6[%c0_49, %c0_50, %c0_51] : memref<2x1x64xf32, #tpu.memory_space<vmem>>, vector<1x1x64xf32>
      %47 = vector.shape_cast %46 : vector<1x1x64xf32> to vector<1x64xf32>
      %48 = vector.broadcast %47 : vector<1x64xf32> to vector<4x64xf32>
      %49 = arith.addf %45, %48 : vector<4x64xf32>
      %50 = vector.extract_strided_slice %49 {offsets = [0, 0], sizes = [2, 64], strides = [1, 1]} : vector<4x64xf32> to vector<2x64xf32>
      %51 = arith.addf %33, %50 : vector<2x64xf32>
      %52 = vector.extract_strided_slice %49 {offsets = [2, 0], sizes = [2, 64], strides = [1, 1]} : vector<4x64xf32> to vector<2x64xf32>
      %53 = arith.addf %51, %52 : vector<2x64xf32>
      %54 = arith.negf %53 : vector<2x64xf32>
      %55 = math.exp %54 : vector<2x64xf32>
      %cst_52 = arith.constant 1.000000e+00 : f32
      %56 = vector.broadcast %cst_52 : f32 to vector<2x64xf32>
      %57 = arith.addf %56, %55 : vector<2x64xf32>
      %58 = arith.divf %56, %57 : vector<2x64xf32>
      %c1 = arith.constant 1 : index
      %c0_53 = arith.constant 0 : index
      %c0_54 = arith.constant 0 : index
      %59 = vector.load %arg3[%c1, %c0_53, %c0_54] : memref<2x128x8xf32, #tpu.memory_space<vmem>>, vector<1x128x8xf32>
      %60 = vector.shape_cast %59 : vector<1x128x8xf32> to vector<128x8xf32>
      %cst_55 = arith.constant dense<0.000000e+00> : vector<4x8xf32>
      %61 = tpu.matmul %32, %60, %cst_55 {dimension_numbers = #tpu.dot_dimension_numbers<[1], [0], [0], [1], [0, 0, 1, 1], [], []>} : vector<4x128xf32>, vector<128x8xf32>, vector<4x8xf32> -> vector<4x8xf32>
      %c1_56 = arith.constant 1 : index
      %c0_57 = arith.constant 0 : index
      %c0_58 = arith.constant 0 : index
      %62 = vector.load %arg4[%c1_56, %c0_57, %c0_58] : memref<2x1x8xf32, #tpu.memory_space<vmem>>, vector<1x1x8xf32>
      %63 = vector.shape_cast %62 : vector<1x1x8xf32> to vector<1x8xf32>
      %64 = vector.broadcast %63 : vector<1x8xf32> to vector<4x8xf32>
      %65 = arith.addf %61, %64 : vector<4x8xf32>
      %cst_59 = arith.constant 0.000000e+00 : f32
      %66 = vector.broadcast %cst_59 : f32 to vector<4x8xf32>
      %67 = arith.maximumf %65, %66 : vector<4x8xf32>
      %c1_60 = arith.constant 1 : index
      %c0_61 = arith.constant 0 : index
      %c0_62 = arith.constant 0 : index
      %68 = vector.load %arg5[%c1_60, %c0_61, %c0_62] : memref<2x8x64xf32, #tpu.memory_space<vmem>>, vector<1x8x64xf32>
      %69 = vector.shape_cast %68 : vector<1x8x64xf32> to vector<8x64xf32>
      %cst_63 = arith.constant dense<0.000000e+00> : vector<4x64xf32>
      %70 = tpu.matmul %67, %69, %cst_63 {dimension_numbers = #tpu.dot_dimension_numbers<[1], [0], [0], [1], [0, 0, 1, 1], [], []>} : vector<4x8xf32>, vector<8x64xf32>, vector<4x64xf32> -> vector<4x64xf32>
      %c1_64 = arith.constant 1 : index
      %c0_65 = arith.constant 0 : index
      %c0_66 = arith.constant 0 : index
      %71 = vector.load %arg6[%c1_64, %c0_65, %c0_66] : memref<2x1x64xf32, #tpu.memory_space<vmem>>, vector<1x1x64xf32>
      %72 = vector.shape_cast %71 : vector<1x1x64xf32> to vector<1x64xf32>
      %73 = vector.broadcast %72 : vector<1x64xf32> to vector<4x64xf32>
      %74 = arith.addf %70, %73 : vector<4x64xf32>
      %75 = vector.extract_strided_slice %74 {offsets = [0, 0], sizes = [2, 64], strides = [1, 1]} : vector<4x64xf32> to vector<2x64xf32>
      %76 = arith.addf %53, %75 : vector<2x64xf32>
      %77 = vector.extract_strided_slice %74 {offsets = [2, 0], sizes = [2, 64], strides = [1, 1]} : vector<4x64xf32> to vector<2x64xf32>
      %78 = arith.addf %76, %77 : vector<2x64xf32>
      %79 = arith.negf %78 : vector<2x64xf32>
      %80 = math.exp %79 : vector<2x64xf32>
      %cst_67 = arith.constant 1.000000e+00 : f32
      %81 = vector.broadcast %cst_67 : f32 to vector<2x64xf32>
      %82 = arith.addf %81, %80 : vector<2x64xf32>
      %83 = arith.divf %81, %82 : vector<2x64xf32>
      %84 = tpu.concatenate %58, %83 in 1 : vector<2x64xf32>, vector<2x64xf32> -> vector<2x128xf32>
      %c0_68 = arith.constant 0 : index
      %c0_69 = arith.constant 0 : index
      %85 = vector.load %arg7[%c0_68, %c0_69] : memref<2x128xf32, #tpu.memory_space<vmem>>, vector<2x128xf32>
      tpu.vector_store %arg7[%c0_68, %c0_69], %84 {strides = array<i32>} : memref<2x128xf32, #tpu.memory_space<vmem>>, vector<2x128xf32>,
    } else {
    }
    return
  }
  func.func @transform_0(%arg0: i32) -> (i32, i32, i32) {
    %c0_i32 = arith.constant 0 : i32
    %c0_i32_0 = arith.constant 0 : i32
    %c0_i32_1 = arith.constant 0 : i32
    return %c0_i32, %c0_i32_0, %arg0 : i32, i32, i32
  }
  func.func @transform_1(%arg0: i32) -> (i32, i32, i32) {
    %c0_i32 = arith.constant 0 : i32
    %c0_i32_0 = arith.constant 0 : i32
    %c0_i32_1 = arith.constant 0 : i32
    return %c0_i32, %c0_i32_0, %arg0 : i32, i32, i32
  }
  func.func @transform_2(%arg0: i32) -> (i32, i32, i32) {
    %c0_i32 = arith.constant 0 : i32
    %c0_i32_0 = arith.constant 0 : i32
    %c0_i32_1 = arith.constant 0 : i32
    %c0_i32_2 = arith.constant 0 : i32
    return %c0_i32, %c0_i32_0, %c0_i32_1 : i32, i32, i32
  }
  func.func @transform_3(%arg0: i32) -> (i32, i32, i32) {
    %c0_i32 = arith.constant 0 : i32
    %c0_i32_0 = arith.constant 0 : i32
    %c0_i32_1 = arith.constant 0 : i32
    %c0_i32_2 = arith.constant 0 : i32
    return %c0_i32, %c0_i32_0, %c0_i32_1 : i32, i32, i32
  }
  func.func @transform_4(%arg0: i32) -> (i32, i32, i32) {
    %c0_i32 = arith.constant 0 : i32
    %c0_i32_0 = arith.constant 0 : i32
    %c0_i32_1 = arith.constant 0 : i32
    %c0_i32_2 = arith.constant 0 : i32
    return %c0_i32, %c0_i32_0, %c0_i32_1 : i32, i32, i32
  }
  func.func @transform_5(%arg0: i32) -> (i32, i32, i32) {
    %c0_i32 = arith.constant 0 : i32
    %c0_i32_0 = arith.constant 0 : i32
    %c0_i32_1 = arith.constant 0 : i32
    %c0_i32_2 = arith.constant 0 : i32
    return %c0_i32, %c0_i32_0, %c0_i32_1 : i32, i32, i32
  }
  func.func @transform_6(%arg0: i32) -> (i32, i32) {
    %c0_i32 = arith.constant 0 : i32
    %c0_i32_0 = arith.constant 0 : i32
    %c0_i32_1 = arith.constant 0 : i32
    return %c0_i32, %c0_i32_0 : i32, i32
  }
}

</mosaic_0001>

<llo_original>
// kernel: tpu_custom_call.1
$region0: #{tpu_custom_call.1}
  #allocation0 [shape = 'u32[]', space=smem, size = 0x4, offset = 0x4, fixed_abs, tag = 'smem constant byte address 0x4 - core index']
  #allocation1 [shape = 'u32[144,128]{1,0:T(1,128)}', space=vmem, size = 0x12000, scoped, tag = 'internal scratch']
  #allocation2 [shape = 'f32[2,64]{1,0:T(2,128)}', space=vmem, size = 0x400, scoped, tag = 'scratch operand']
  #allocation3 [shape = 'f32[2,64]{1,0:T(2,128)}', space=vmem, size = 0x400, scoped, tag = 'scratch operand']
  #allocation4 [shape = 'f32[2,64]{1,0:T(2,128)}', space=vmem, size = 0x400, scoped, tag = 'scratch operand']
  #allocation5 [shape = 'f32[2,64]{1,0:T(2,128)}', space=vmem, size = 0x400, scoped, tag = 'scratch operand']
  %s0 = inlined_call_operand.vmem [shape: f32[2,64,256], index: 0, kind: input, shape index: {}]
  %s1 = inlined_call_operand.hbm [shape: f32[2,64,256], index: 1, kind: input, shape index: {}]
  %s2 = inlined_call_operand.vmem [shape: f32[2,128,8], index: 2, kind: input, shape index: {}]
  %s3 = inlined_call_operand.vmem [shape: f32[2,1,8], index: 3, kind: input, shape index: {}]
  %s4 = inlined_call_operand.vmem [shape: f32[2,8,64], index: 4, kind: input, shape index: {}]
  %s5 = inlined_call_operand.vmem [shape: f32[2,1,64], index: 5, kind: input, shape index: {}]
  %s6 = inlined_call_operand.hbm [shape: f32[2,128], index: 6, kind: output, shape index: {}]
  %s7 = sld [smem:[#allocation0]]
  $region46: #{tpu_custom_call.1} parent=0
    _
  %s9 = ssub.s32 1, %s7
  %s10 = scalar_select 0, %s9, %s7
  $region1: #{tpu_custom_call.1} parent=0
    #allocation6 [shape = 'u8[131072]{0}', space=vmem, size = 0x20000, scoped, tag = 'input window, operand 1, single buffered']
    #allocation7 [shape = 's32[1]{0}', space=sflag, size = 0x4, scoped, tag = 'scoped memory for tpu_custom_call.1']
    #allocation8 [shape = 's32[1]{0}', space=sflag, size = 0x4, scoped, tag = 'scoped memory for tpu_custom_call.1']
    #allocation9 [shape = 'u8[1024]{0}', space=vmem, size = 0x400, scoped, tag = 'output window, operand 0, single buffered']
    %11 = vsyncpa [#allocation7], 0
    %12 = vsyncpa [#allocation8], 0
    // Predicated region
    $region2: #{tpu_custom_call.1} parent=1 // pred_check
      _
    $region3: #{tpu_custom_call.1} parent=1 // pred_check_branch
      %14 = sbr.rel (0) target = $region5
    $region4: #{tpu_custom_call.1} parent=1 // pred_region
      _
    $region5: #{tpu_custom_call.1} parent=1 // pred_fallthru
      _
    // Predicated region
    $region6: #{tpu_custom_call.1} parent=1 // pred_check
      _
    $region7: #{tpu_custom_call.1} parent=1 // pred_check_branch
      %16 = sbr.rel (0) target = $region9
    $region8: #{tpu_custom_call.1} parent=1 // pred_region
      %s18 = ssub.s32 4096, 4096
      %19 = vsyncadd [#allocation7], %s18
      %s20 = sshll.u32 [#allocation6], 4
      %s21 = int_to_ptr.vmem [resolvable:$true] %s20
      %26 = dma.hbm_to_vmem [thread:$0]  %s1, 4096, %s21, [#allocation7], 256, 256, 16
    $region9: #{tpu_custom_call.1} parent=1 // pred_fallthru
      _
    // Predicated region
    $region10: #{tpu_custom_call.1} parent=1 // pred_check
      _
    $region11: #{tpu_custom_call.1} parent=1 // pred_check_branch
      %28 = sbr.rel (0) target = $region13
    $region12: #{tpu_custom_call.1} parent=1 // pred_region
      _
    $region13: #{tpu_custom_call.1} parent=1 // pred_fallthru
      _
    // Predicated region
    $region14: #{tpu_custom_call.1} parent=1 // pred_check
      _
    $region15: #{tpu_custom_call.1} parent=1 // pred_check_branch
      %30 = sbr.rel (0) target = $region17
    $region16: #{tpu_custom_call.1} parent=1 // pred_region
      _
    $region17: #{tpu_custom_call.1} parent=1 // pred_fallthru
      _
    // Predicated region
    $region18: #{tpu_custom_call.1} parent=1 // pred_check
      _
    $region19: #{tpu_custom_call.1} parent=1 // pred_check_branch
      %32 = sbr.rel (0) target = $region21
    $region20: #{tpu_custom_call.1} parent=1 // pred_region
      _
    $region21: #{tpu_custom_call.1} parent=1 // pred_fallthru
      _
    // Predicated region
    $region22: #{tpu_custom_call.1} parent=1 // pred_check
      _
    $region23: #{tpu_custom_call.1} parent=1 // pred_check_branch
      %34 = sbr.rel (0) target = $region25
    $region24: #{tpu_custom_call.1} parent=1 // pred_region
      _
    $region25: #{tpu_custom_call.1} parent=1 // pred_fallthru
      _
    // Predicated region
    $region26: #{tpu_custom_call.1} parent=1 // pred_check
      _
    $region27: #{tpu_custom_call.1} parent=1 // pred_check_branch
      %36 = sbr.rel (0) target = $region29
    $region28: #{tpu_custom_call.1} parent=1 // pred_region
      %37 = dma.done [#allocation7], 4096
    $region29: #{tpu_custom_call.1} parent=1 // pred_fallthru
      _
    %p38 = scmp.eq.s32.totalorder 0, 0
    // Predicated region
    $region30: #{tpu_custom_call.1} parent=1 // pred_check
      %p39 = pneg %p38
    $region31: #{tpu_custom_call.1} parent=1 // pred_check_branch
      %41 = sbr.rel (%p39) target = $region33
    $region32: #{tpu_custom_call.1} parent=1 // pred_region
      %vm42 = vcmask 517120
      %43 = vst.msk [vmem:[#allocation2] sm:$0x3] %vm42, 0.0
      %44 = vst.msk [vmem:[#allocation3] sm:$0x3] %vm42, 0.0
      %45 = vst.msk [vmem:[#allocation4] sm:$0x3] %vm42, -inf
      %46 = vst.msk [vmem:[#allocation5] sm:$0x3] %vm42, -inf
    $region33: #{tpu_custom_call.1} parent=1 // pred_fallthru
      _
    %v47 = vld [vmem:[%s0] sm:$0xff]
    %v48 = vld [vmem:[%s0 + $0x8] sm:$0xff]
    %v49 = vld [vmem:[%s0 + $0x10] sm:$0xff]
    %v50 = vld [vmem:[%s0 + $0x18] sm:$0xff]
    %v51 = vld [vmem:[%s0 + $0x20] sm:$0xff]
    %v52 = vld [vmem:[%s0 + $0x28] sm:$0xff]
    %v53 = vld [vmem:[%s0 + $0x30] sm:$0xff]
    %v54 = vld [vmem:[%s0 + $0x38] sm:$0xff]
    %v55 = vld [vmem:[%s0 + $0x40] sm:$0xff]
    %v56 = vld [vmem:[%s0 + $0x48] sm:$0xff]
    %v57 = vld [vmem:[%s0 + $0x50] sm:$0xff]
    %v58 = vld [vmem:[%s0 + $0x58] sm:$0xff]
    %v59 = vld [vmem:[%s0 + $0x60] sm:$0xff]
    %v60 = vld [vmem:[%s0 + $0x68] sm:$0xff]
    %v61 = vld [vmem:[%s0 + $0x70] sm:$0xff]
    %v62 = vld [vmem:[%s0 + $0x78] sm:$0xff]
    %v63 = vld [vmem:[%s0 + $0x80] sm:$0xff]
    %v64 = vld [vmem:[%s0 + $0x88] sm:$0xff]
    %v65 = vld [vmem:[%s0 + $0x90] sm:$0xff]
    %v66 = vld [vmem:[%s0 + $0x98] sm:$0xff]
    %v67 = vld [vmem:[%s0 + $0xa0] sm:$0xff]
    %v68 = vld [vmem:[%s0 + $0xa8] sm:$0xff]
    %v69 = vld [vmem:[%s0 + $0xb0] sm:$0xff]
    %v70 = vld [vmem:[%s0 + $0xb8] sm:$0xff]
    %v71 = vld [vmem:[%s0 + $0xc0] sm:$0xff]
    %v72 = vld [vmem:[%s0 + $0xc8] sm:$0xff]
    %v73 = vld [vmem:[%s0 + $0xd0] sm:$0xff]
    %v74 = vld [vmem:[%s0 + $0xd8] sm:$0xff]
    %v75 = vld [vmem:[%s0 + $0xe0] sm:$0xff]
    %v76 = vld [vmem:[%s0 + $0xe8] sm:$0xff]
    %v77 = vld [vmem:[%s0 + $0xf0] sm:$0xff]
    %v78 = vld [vmem:[%s0 + $0xf8] sm:$0xff]
    %v79 = vld [vmem:[#allocation2] sm:$0x3]
    %v80 = vadd.f32 %v47, %v48
    %81 = vadd.xlane.f32.xlu0 %v80
    %v82 = vpop.xlane.xlu0 %81
    %v83 = vadd.f32 %v49, %v50
    %84 = vadd.xlane.f32.xlu0 %v83
    %v85 = vpop.xlane.xlu0 %84
    %v86 = vadd.f32 %v51, %v52
    %87 = vadd.xlane.f32.xlu0 %v86
    %v88 = vpop.xlane.xlu0 %87
    %v89 = vadd.f32 %v53, %v54
    %90 = vadd.xlane.f32.xlu0 %v89
    %v91 = vpop.xlane.xlu0 %90
    %v92 = vadd.f32 %v55, %v56
    %93 = vadd.xlane.f32.xlu0 %v92
    %v94 = vpop.xlane.xlu0 %93
    %v95 = vadd.f32 %v57, %v58
    %96 = vadd.xlane.f32.xlu0 %v95
    %v97 = vpop.xlane.xlu0 %96
    %v98 = vadd.f32 %v59, %v60
    %99 = vadd.xlane.f32.xlu0 %v98
    %v100 = vpop.xlane.xlu0 %99
    %v101 = vadd.f32 %v61, %v62
    %102 = vadd.xlane.f32.xlu0 %v101
    %v103 = vpop.xlane.xlu0 %102
    %v104 = vadd.f32 %v63, %v64
    %105 = vadd.xlane.f32.xlu0 %v104
    %v106 = vpop.xlane.xlu0 %105
    %v107 = vadd.f32 %v65, %v66
    %108 = vadd.xlane.f32.xlu0 %v107
    %v109 = vpop.xlane.xlu0 %108
    %v110 = vadd.f32 %v67, %v68
    %111 = vadd.xlane.f32.xlu0 %v110
    %v112 = vpop.xlane.xlu0 %111
    %v113 = vadd.f32 %v69, %v70
    %114 = vadd.xlane.f32.xlu0 %v113
    %v115 = vpop.xlane.xlu0 %114
    %v116 = vadd.f32 %v71, %v72
    %117 = vadd.xlane.f32.xlu0 %v116
    %v118 = vpop.xlane.xlu0 %117
    %v119 = vadd.f32 %v73, %v74
    %120 = vadd.xlane.f32.xlu0 %v119
    %v121 = vpop.xlane.xlu0 %120
    %v122 = vadd.f32 %v75, %v76
    %123 = vadd.xlane.f32.xlu0 %v122
    %v124 = vpop.xlane.xlu0 %123
    %v125 = vadd.f32 %v77, %v78
    %126 = vadd.xlane.f32.xlu0 %v125
    %v127 = vpop.xlane.xlu0 %126
    %v144 = vlaneseq
    %v145 = vand.u32 %v144, 127
    %v146 = vlaneseq
    %v147 = vshrl.u32 %v146, 7
    %v148 = vsub.s32 %v145, %v147
    %v149 = vrot.slane %v82, %v148
    %v150 = vadd.s32 %v145, 4294967288
    %v151 = vlaneseq
    %v152 = vshrl.u32 %v151, 7
    %v153 = vsub.s32 %v150, %v152
    %v154 = vrot.slane %v85, %v153
    %vm155 = vcmask 130112
    %v156 = vsel %vm155, %v154, %v149
    %v157 = vadd.s32 %v145, 4294967280
    %v158 = vlaneseq
    %v159 = vshrl.u32 %v158, 7
    %v160 = vsub.s32 %v157, %v159
    %v161 = vrot.slane %v88, %v160
    %vm162 = vcmask 195712
    %v163 = vsel %vm162, %v161, %v156
    %v164 = vadd.s32 %v145, 4294967272
    %v165 = vlaneseq
    %v166 = vshrl.u32 %v165, 7
    %v167 = vsub.s32 %v164, %v166
    %v168 = vrot.slane %v91, %v167
    %vm169 = vcmask 261312
    %v170 = vsel %vm169, %v168, %v163
    %v171 = vadd.s32 %v145, 4294967264
    %v172 = vlaneseq
    %v173 = vshrl.u32 %v172, 7
    %v174 = vsub.s32 %v171, %v173
    %v175 = vrot.slane %v94, %v174
    %vm176 = vcmask 326912
    %v177 = vsel %vm176, %v175, %v170
    %v178 = vadd.s32 %v145, 4294967256
    %v179 = vlaneseq
    %v180 = vshrl.u32 %v179, 7
    %v181 = vsub.s32 %v178, %v180
    %v182 = vrot.slane %v97, %v181
    %vm183 = vcmask 392512
    %v184 = vsel %vm183, %v182, %v177
    %v185 = vadd.s32 %v145, 4294967248
    %v186 = vlaneseq
    %v187 = vshrl.u32 %v186, 7
    %v188 = vsub.s32 %v185, %v187
    %v189 = vrot.slane %v100, %v188
    %vm190 = vcmask 458112
    %v191 = vsel %vm190, %v189, %v184
    %v192 = vadd.s32 %v145, 4294967240
    %v193 = vlaneseq
    %v194 = vshrl.u32 %v193, 7
    %v195 = vsub.s32 %v192, %v194
    %v196 = vrot.slane %v103, %v195
    %vm197 = vcmask 523712
    %v198 = vsel %vm197, %v196, %v191
    %v199 = vlaneseq
    %v200 = vshrl.u32 %v199, 7
    %v201 = vsub.s32 %v145, %v200
    %v202 = vrot.slane %v106, %v201
    %v203 = vlaneseq
    %v204 = vshrl.u32 %v203, 7
    %v205 = vsub.s32 %v150, %v204
    %v206 = vrot.slane %v109, %v205
    %v207 = vsel %vm155, %v206, %v202
    %v208 = vlaneseq
    %v209 = vshrl.u32 %v208, 7
    %v210 = vsub.s32 %v157, %v209
    %v211 = vrot.slane %v112, %v210
    %v212 = vsel %vm162, %v211, %v207
    %v213 = vlaneseq
    %v214 = vshrl.u32 %v213, 7
    %v215 = vsub.s32 %v164, %v214
    %v216 = vrot.slane %v115, %v215
    %v217 = vsel %vm169, %v216, %v212
    %v218 = vlaneseq
    %v219 = vshrl.u32 %v218, 7
    %v220 = vsub.s32 %v171, %v219
    %v221 = vrot.slane %v118, %v220
    %v222 = vsel %vm176, %v221, %v217
    %v223 = vlaneseq
    %v224 = vshrl.u32 %v223, 7
    %v225 = vsub.s32 %v178, %v224
    %v226 = vrot.slane %v121, %v225
    %v227 = vsel %vm183, %v226, %v222
    %v228 = vlaneseq
    %v229 = vshrl.u32 %v228, 7
    %v230 = vsub.s32 %v185, %v229
    %v231 = vrot.slane %v124, %v230
    %v232 = vsel %vm190, %v231, %v227
    %v233 = vlaneseq
    %v234 = vshrl.u32 %v233, 7
    %v235 = vsub.s32 %v192, %v234
    %v236 = vrot.slane %v127, %v235
    %v237 = vsel %vm197, %v236, %v232
    %vm238 = vcmask 1041409
    %v239 = vsel %vm238, %v237, %v198
    %v241 = vadd.f32 %v79, %v239
    %vm242 = vcmask 517120
    %243 = vst.msk [vmem:[#allocation2] sm:$0x3] %vm242, %v241
    %v244 = vld [vmem:[#allocation4] sm:$0x3]
    %v245 = vmax.f32 %v47, %v48
    %246 = vmax.xlane.f32.xlu0 %v245
    %v247 = vpop.xlane.xlu0 %246
    %v248 = vmax.f32 %v49, %v50
    %249 = vmax.xlane.f32.xlu0 %v248
    %v250 = vpop.xlane.xlu0 %249
    %v251 = vmax.f32 %v51, %v52
    %252 = vmax.xlane.f32.xlu0 %v251
    %v253 = vpop.xlane.xlu0 %252
    %v254 = vmax.f32 %v53, %v54
    %255 = vmax.xlane.f32.xlu0 %v254
    %v256 = vpop.xlane.xlu0 %255
    %v257 = vmax.f32 %v55, %v56
    %258 = vmax.xlane.f32.xlu0 %v257
    %v259 = vpop.xlane.xlu0 %258
    %v260 = vmax.f32 %v57, %v58
    %261 = vmax.xlane.f32.xlu0 %v260
    %v262 = vpop.xlane.xlu0 %261
    %v263 = vmax.f32 %v59, %v60
    %264 = vmax.xlane.f32.xlu0 %v263
    %v265 = vpop.xlane.xlu0 %264
    %v266 = vmax.f32 %v61, %v62
    %267 = vmax.xlane.f32.xlu0 %v266
    %v268 = vpop.xlane.xlu0 %267
    %v269 = vmax.f32 %v63, %v64
    %270 = vmax.xlane.f32.xlu0 %v269
    %v271 = vpop.xlane.xlu0 %270
    %v272 = vmax.f32 %v65, %v66
    %273 = vmax.xlane.f32.xlu0 %v272
    %v274 = vpop.xlane.xlu0 %273
    %v275 = vmax.f32 %v67, %v68
    %276 = vmax.xlane.f32.xlu0 %v275
    %v277 = vpop.xlane.xlu0 %276
    %v278 = vmax.f32 %v69, %v70
    %279 = vmax.xlane.f32.xlu0 %v278
    %v280 = vpop.xlane.xlu0 %279
    %v281 = vmax.f32 %v71, %v72
    %282 = vmax.xlane.f32.xlu0 %v281
    %v283 = vpop.xlane.xlu0 %282
    %v284 = vmax.f32 %v73, %v74
    %285 = vmax.xlane.f32.xlu0 %v284
    %v286 = vpop.xlane.xlu0 %285
    %v287 = vmax.f32 %v75, %v76
    %288 = vmax.xlane.f32.xlu0 %v287
    %v289 = vpop.xlane.xlu0 %288
    %v290 = vmax.f32 %v77, %v78
    %291 = vmax.xlane.f32.xlu0 %v290
    %v292 = vpop.xlane.xlu0 %291
    %v309 = vlaneseq
    %v310 = vshrl.u32 %v309, 7
    %v311 = vsub.s32 %v145, %v310
    %v312 = vrot.slane %v247, %v311
    %v313 = vlaneseq
    %v314 = vshrl.u32 %v313, 7
    %v315 = vsub.s32 %v150, %v314
    %v316 = vrot.slane %v250, %v315
    %v317 = vsel %vm155, %v316, %v312
    %v318 = vlaneseq
    %v319 = vshrl.u32 %v318, 7
    %v320 = vsub.s32 %v157, %v319
    %v321 = vrot.slane %v253, %v320
    %v322 = vsel %vm162, %v321, %v317
    %v323 = vlaneseq
    %v324 = vshrl.u32 %v323, 7
    %v325 = vsub.s32 %v164, %v324
    %v326 = vrot.slane %v256, %v325
    %v327 = vsel %vm169, %v326, %v322
    %v328 = vlaneseq
    %v329 = vshrl.u32 %v328, 7
    %v330 = vsub.s32 %v171, %v329
    %v331 = vrot.slane %v259, %v330
    %v332 = vsel %vm176, %v331, %v327
    %v333 = vlaneseq
    %v334 = vshrl.u32 %v333, 7
    %v335 = vsub.s32 %v178, %v334
    %v336 = vrot.slane %v262, %v335
    %v337 = vsel %vm183, %v336, %v332
    %v338 = vlaneseq
    %v339 = vshrl.u32 %v338, 7
    %v340 = vsub.s32 %v185, %v339
    %v341 = vrot.slane %v265, %v340
    %v342 = vsel %vm190, %v341, %v337
    %v343 = vlaneseq
    %v344 = vshrl.u32 %v343, 7
    %v345 = vsub.s32 %v192, %v344
    %v346 = vrot.slane %v268, %v345
    %v347 = vsel %vm197, %v346, %v342
    %v348 = vlaneseq
    %v349 = vshrl.u32 %v348, 7
    %v350 = vsub.s32 %v145, %v349
    %v351 = vrot.slane %v271, %v350
    %v352 = vlaneseq
    %v353 = vshrl.u32 %v352, 7
    %v354 = vsub.s32 %v150, %v353
    %v355 = vrot.slane %v274, %v354
    %v356 = vsel %vm155, %v355, %v351
    %v357 = vlaneseq
    %v358 = vshrl.u32 %v357, 7
    %v359 = vsub.s32 %v157, %v358
    %v360 = vrot.slane %v277, %v359
    %v361 = vsel %vm162, %v360, %v356
    %v362 = vlaneseq
    %v363 = vshrl.u32 %v362, 7
    %v364 = vsub.s32 %v164, %v363
    %v365 = vrot.slane %v280, %v364
    %v366 = vsel %vm169, %v365, %v361
    %v367 = vlaneseq
    %v368 = vshrl.u32 %v367, 7
    %v369 = vsub.s32 %v171, %v368
    %v370 = vrot.slane %v283, %v369
    %v371 = vsel %vm176, %v370, %v366
    %v372 = vlaneseq
    %v373 = vshrl.u32 %v372, 7
    %v374 = vsub.s32 %v178, %v373
    %v375 = vrot.slane %v286, %v374
    %v376 = vsel %vm183, %v375, %v371
    %v377 = vlaneseq
    %v378 = vshrl.u32 %v377, 7
    %v379 = vsub.s32 %v185, %v378
    %v380 = vrot.slane %v289, %v379
    %v381 = vsel %vm190, %v380, %v376
    %v382 = vlaneseq
    %v383 = vshrl.u32 %v382, 7
    %v384 = vsub.s32 %v192, %v383
    %v385 = vrot.slane %v292, %v384
    %v386 = vsel %vm197, %v385, %v381
    %v387 = vsel %vm238, %v386, %v347
    %v389 = vmax.f32 %v244, %v387
    %390 = vst.msk [vmem:[#allocation4] sm:$0x3] %vm242, %v389
    %v391 = vld [vmem:[#allocation6] sm:$0xff]
    %v392 = vld [vmem:[#allocation6 + $0x8] sm:$0xff]
    %v393 = vld [vmem:[#allocation6 + $0x10] sm:$0xff]
    %v394 = vld [vmem:[#allocation6 + $0x18] sm:$0xff]
    %v395 = vld [vmem:[#allocation6 + $0x20] sm:$0xff]
    %v396 = vld [vmem:[#allocation6 + $0x28] sm:$0xff]
    %v397 = vld [vmem:[#allocation6 + $0x30] sm:$0xff]
    %v398 = vld [vmem:[#allocation6 + $0x38] sm:$0xff]
    %v399 = vld [vmem:[#allocation6 + $0x40] sm:$0xff]
    %v400 = vld [vmem:[#allocation6 + $0x48] sm:$0xff]
    %v401 = vld [vmem:[#allocation6 + $0x50] sm:$0xff]
    %v402 = vld [vmem:[#allocation6 + $0x58] sm:$0xff]
    %v403 = vld [vmem:[#allocation6 + $0x60] sm:$0xff]
    %v404 = vld [vmem:[#allocation6 + $0x68] sm:$0xff]
    %v405 = vld [vmem:[#allocation6 + $0x70] sm:$0xff]
    %v406 = vld [vmem:[#allocation6 + $0x78] sm:$0xff]
    %v407 = vld [vmem:[#allocation6 + $0x80] sm:$0xff]
    %v408 = vld [vmem:[#allocation6 + $0x88] sm:$0xff]
    %v409 = vld [vmem:[#allocation6 + $0x90] sm:$0xff]
    %v410 = vld [vmem:[#allocation6 + $0x98] sm:$0xff]
    %v411 = vld [vmem:[#allocation6 + $0xa0] sm:$0xff]
    %v412 = vld [vmem:[#allocation6 + $0xa8] sm:$0xff]
    %v413 = vld [vmem:[#allocation6 + $0xb0] sm:$0xff]
    %v414 = vld [vmem:[#allocation6 + $0xb8] sm:$0xff]
    %v415 = vld [vmem:[#allocation6 + $0xc0] sm:$0xff]
    %v416 = vld [vmem:[#allocation6 + $0xc8] sm:$0xff]
    %v417 = vld [vmem:[#allocation6 + $0xd0] sm:$0xff]
    %v418 = vld [vmem:[#allocation6 + $0xd8] sm:$0xff]
    %v419 = vld [vmem:[#allocation6 + $0xe0] sm:$0xff]
    %v420 = vld [vmem:[#allocation6 + $0xe8] sm:$0xff]
    %v421 = vld [vmem:[#allocation6 + $0xf0] sm:$0xff]
    %v422 = vld [vmem:[#allocation6 + $0xf8] sm:$0xff]
    %v423 = vld [vmem:[#allocation3] sm:$0x3]
    %v424 = vadd.f32 %v391, %v392
    %425 = vadd.xlane.f32.xlu0 %v424
    %v426 = vpop.xlane.xlu0 %425
    %v427 = vadd.f32 %v393, %v394
    %428 = vadd.xlane.f32.xlu0 %v427
    %v429 = vpop.xlane.xlu0 %428
    %v430 = vadd.f32 %v395, %v396
    %431 = vadd.xlane.f32.xlu0 %v430
    %v432 = vpop.xlane.xlu0 %431
    %v433 = vadd.f32 %v397, %v398
    %434 = vadd.xlane.f32.xlu0 %v433
    %v435 = vpop.xlane.xlu0 %434
    %v436 = vadd.f32 %v399, %v400
    %437 = vadd.xlane.f32.xlu0 %v436
    %v438 = vpop.xlane.xlu0 %437
    %v439 = vadd.f32 %v401, %v402
    %440 = vadd.xlane.f32.xlu0 %v439
    %v441 = vpop.xlane.xlu0 %440
    %v442 = vadd.f32 %v403, %v404
    %443 = vadd.xlane.f32.xlu0 %v442
    %v444 = vpop.xlane.xlu0 %443
    %v445 = vadd.f32 %v405, %v406
    %446 = vadd.xlane.f32.xlu0 %v445
    %v447 = vpop.xlane.xlu0 %446
    %v448 = vadd.f32 %v407, %v408
    %449 = vadd.xlane.f32.xlu0 %v448
    %v450 = vpop.xlane.xlu0 %449
    %v451 = vadd.f32 %v409, %v410
    %452 = vadd.xlane.f32.xlu0 %v451
    %v453 = vpop.xlane.xlu0 %452
    %v454 = vadd.f32 %v411, %v412
    %455 = vadd.xlane.f32.xlu0 %v454
    %v456 = vpop.xlane.xlu0 %455
    %v457 = vadd.f32 %v413, %v414
    %458 = vadd.xlane.f32.xlu0 %v457
    %v459 = vpop.xlane.xlu0 %458
    %v460 = vadd.f32 %v415, %v416
    %461 = vadd.xlane.f32.xlu0 %v460
    %v462 = vpop.xlane.xlu0 %461
    %v463 = vadd.f32 %v417, %v418
    %464 = vadd.xlane.f32.xlu0 %v463
    %v465 = vpop.xlane.xlu0 %464
    %v466 = vadd.f32 %v419, %v420
    %467 = vadd.xlane.f32.xlu0 %v466
    %v468 = vpop.xlane.xlu0 %467
    %v469 = vadd.f32 %v421, %v422
    %470 = vadd.xlane.f32.xlu0 %v469
    %v471 = vpop.xlane.xlu0 %470
    %v488 = vlaneseq
    %v489 = vshrl.u32 %v488, 7
    %v490 = vsub.s32 %v145, %v489
    %v491 = vrot.slane %v426, %v490
    %v492 = vlaneseq
    %v493 = vshrl.u32 %v492, 7
    %v494 = vsub.s32 %v150, %v493
    %v495 = vrot.slane %v429, %v494
    %v496 = vsel %vm155, %v495, %v491
    %v497 = vlaneseq
    %v498 = vshrl.u32 %v497, 7
    %v499 = vsub.s32 %v157, %v498
    %v500 = vrot.slane %v432, %v499
    %v501 = vsel %vm162, %v500, %v496
    %v502 = vlaneseq
    %v503 = vshrl.u32 %v502, 7
    %v504 = vsub.s32 %v164, %v503
    %v505 = vrot.slane %v435, %v504
    %v506 = vsel %vm169, %v505, %v501
    %v507 = vlaneseq
    %v508 = vshrl.u32 %v507, 7
    %v509 = vsub.s32 %v171, %v508
    %v510 = vrot.slane %v438, %v509
    %v511 = vsel %vm176, %v510, %v506
    %v512 = vlaneseq
    %v513 = vshrl.u32 %v512, 7
    %v514 = vsub.s32 %v178, %v513
    %v515 = vrot.slane %v441, %v514
    %v516 = vsel %vm183, %v515, %v511
    %v517 = vlaneseq
    %v518 = vshrl.u32 %v517, 7
    %v519 = vsub.s32 %v185, %v518
    %v520 = vrot.slane %v444, %v519
    %v521 = vsel %vm190, %v520, %v516
    %v522 = vlaneseq
    %v523 = vshrl.u32 %v522, 7
    %v524 = vsub.s32 %v192, %v523
    %v525 = vrot.slane %v447, %v524
    %v526 = vsel %vm197, %v525, %v521
    %v527 = vlaneseq
    %v528 = vshrl.u32 %v527, 7
    %v529 = vsub.s32 %v145, %v528
    %v530 = vrot.slane %v450, %v529
    %v531 = vlaneseq
    %v532 = vshrl.u32 %v531, 7
    %v533 = vsub.s32 %v150, %v532
    %v534 = vrot.slane %v453, %v533
    %v535 = vsel %vm155, %v534, %v530
    %v536 = vlaneseq
    %v537 = vshrl.u32 %v536, 7
    %v538 = vsub.s32 %v157, %v537
    %v539 = vrot.slane %v456, %v538
    %v540 = vsel %vm162, %v539, %v535
    %v541 = vlaneseq
    %v542 = vshrl.u32 %v541, 7
    %v543 = vsub.s32 %v164, %v542
    %v544 = vrot.slane %v459, %v543
    %v545 = vsel %vm169, %v544, %v540
    %v546 = vlaneseq
    %v547 = vshrl.u32 %v546, 7
    %v548 = vsub.s32 %v171, %v547
    %v549 = vrot.slane %v462, %v548
    %v550 = vsel %vm176, %v549, %v545
    %v551 = vlaneseq
    %v552 = vshrl.u32 %v551, 7
    %v553 = vsub.s32 %v178, %v552
    %v554 = vrot.slane %v465, %v553
    %v555 = vsel %vm183, %v554, %v550
    %v556 = vlaneseq
    %v557 = vshrl.u32 %v556, 7
    %v558 = vsub.s32 %v185, %v557
    %v559 = vrot.slane %v468, %v558
    %v560 = vsel %vm190, %v559, %v555
    %v561 = vlaneseq
    %v562 = vshrl.u32 %v561, 7
    %v563 = vsub.s32 %v192, %v562
    %v564 = vrot.slane %v471, %v563
    %v565 = vsel %vm197, %v564, %v560
    %v566 = vsel %vm238, %v565, %v526
    %v568 = vadd.f32 %v423, %v566
    %569 = vst.msk [vmem:[#allocation3] sm:$0x3] %vm242, %v568
    %v570 = vld [vmem:[#allocation5] sm:$0x3]
    %v571 = vmax.f32 %v391, %v392
    %572 = vmax.xlane.f32.xlu0 %v571
    %v573 = vpop.xlane.xlu0 %572
    %v574 = vmax.f32 %v393, %v394
    %575 = vmax.xlane.f32.xlu0 %v574
    %v576 = vpop.xlane.xlu0 %575
    %v577 = vmax.f32 %v395, %v396
    %578 = vmax.xlane.f32.xlu0 %v577
    %v579 = vpop.xlane.xlu0 %578
    %v580 = vmax.f32 %v397, %v398
    %581 = vmax.xlane.f32.xlu0 %v580
    %v582 = vpop.xlane.xlu0 %581
    %v583 = vmax.f32 %v399, %v400
    %584 = vmax.xlane.f32.xlu0 %v583
    %v585 = vpop.xlane.xlu0 %584
    %v586 = vmax.f32 %v401, %v402
    %587 = vmax.xlane.f32.xlu0 %v586
    %v588 = vpop.xlane.xlu0 %587
    %v589 = vmax.f32 %v403, %v404
    %590 = vmax.xlane.f32.xlu0 %v589
    %v591 = vpop.xlane.xlu0 %590
    %v592 = vmax.f32 %v405, %v406
    %593 = vmax.xlane.f32.xlu0 %v592
    %v594 = vpop.xlane.xlu0 %593
    %v595 = vmax.f32 %v407, %v408
    %596 = vmax.xlane.f32.xlu0 %v595
    %v597 = vpop.xlane.xlu0 %596
    %v598 = vmax.f32 %v409, %v410
    %599 = vmax.xlane.f32.xlu0 %v598
    %v600 = vpop.xlane.xlu0 %599
    %v601 = vmax.f32 %v411, %v412
    %602 = vmax.xlane.f32.xlu0 %v601
    %v603 = vpop.xlane.xlu0 %602
    %v604 = vmax.f32 %v413, %v414
    %605 = vmax.xlane.f32.xlu0 %v604
    %v606 = vpop.xlane.xlu0 %605
    %v607 = vmax.f32 %v415, %v416
    %608 = vmax.xlane.f32.xlu0 %v607
    %v609 = vpop.xlane.xlu0 %608
    %v610 = vmax.f32 %v417, %v418
    %611 = vmax.xlane.f32.xlu0 %v610
    %v612 = vpop.xlane.xlu0 %611
    %v613 = vmax.f32 %v419, %v420
    %614 = vmax.xlane.f32.xlu0 %v613
    %v615 = vpop.xlane.xlu0 %614
    %v616 = vmax.f32 %v421, %v422
    %617 = vmax.xlane.f32.xlu0 %v616
    %v618 = vpop.xlane.xlu0 %617
    %v635 = vlaneseq
    %v636 = vshrl.u32 %v635, 7
    %v637 = vsub.s32 %v145, %v636
    %v638 = vrot.slane %v573, %v637
    %v639 = vlaneseq
    %v640 = vshrl.u32 %v639, 7
    %v641 = vsub.s32 %v150, %v640
    %v642 = vrot.slane %v576, %v641
    %v643 = vsel %vm155, %v642, %v638
    %v644 = vlaneseq
    %v645 = vshrl.u32 %v644, 7
    %v646 = vsub.s32 %v157, %v645
    %v647 = vrot.slane %v579, %v646
    %v648 = vsel %vm162, %v647, %v643
    %v649 = vlaneseq
    %v650 = vshrl.u32 %v649, 7
    %v651 = vsub.s32 %v164, %v650
    %v652 = vrot.slane %v582, %v651
    %v653 = vsel %vm169, %v652, %v648
    %v654 = vlaneseq
    %v655 = vshrl.u32 %v654, 7
    %v656 = vsub.s32 %v171, %v655
    %v657 = vrot.slane %v585, %v656
    %v658 = vsel %vm176, %v657, %v653
    %v659 = vlaneseq
    %v660 = vshrl.u32 %v659, 7
    %v661 = vsub.s32 %v178, %v660
    %v662 = vrot.slane %v588, %v661
    %v663 = vsel %vm183, %v662, %v658
    %v664 = vlaneseq
    %v665 = vshrl.u32 %v664, 7
    %v666 = vsub.s32 %v185, %v665
    %v667 = vrot.slane %v591, %v666
    %v668 = vsel %vm190, %v667, %v663
    %v669 = vlaneseq
    %v670 = vshrl.u32 %v669, 7
    %v671 = vsub.s32 %v192, %v670
    %v672 = vrot.slane %v594, %v671
    %v673 = vsel %vm197, %v672, %v668
    %v674 = vlaneseq
    %v675 = vshrl.u32 %v674, 7
    %v676 = vsub.s32 %v145, %v675
    %v677 = vrot.slane %v597, %v676
    %v678 = vlaneseq
    %v679 = vshrl.u32 %v678, 7
    %v680 = vsub.s32 %v150, %v679
    %v681 = vrot.slane %v600, %v680
    %v682 = vsel %vm155, %v681, %v677
    %v683 = vlaneseq
    %v684 = vshrl.u32 %v683, 7
    %v685 = vsub.s32 %v157, %v684
    %v686 = vrot.slane %v603, %v685
    %v687 = vsel %vm162, %v686, %v682
    %v688 = vlaneseq
    %v689 = vshrl.u32 %v688, 7
    %v690 = vsub.s32 %v164, %v689
    %v691 = vrot.slane %v606, %v690
    %v692 = vsel %vm169, %v691, %v687
    %v693 = vlaneseq
    %v694 = vshrl.u32 %v693, 7
    %v695 = vsub.s32 %v171, %v694
    %v696 = vrot.slane %v609, %v695
    %v697 = vsel %vm176, %v696, %v692
    %v698 = vlaneseq
    %v699 = vshrl.u32 %v698, 7
    %v700 = vsub.s32 %v178, %v699
    %v701 = vrot.slane %v612, %v700
    %v702 = vsel %vm183, %v701, %v697
    %v703 = vlaneseq
    %v704 = vshrl.u32 %v703, 7
    %v705 = vsub.s32 %v185, %v704
    %v706 = vrot.slane %v615, %v705
    %v707 = vsel %vm190, %v706, %v702
    %v708 = vlaneseq
    %v709 = vshrl.u32 %v708, 7
    %v710 = vsub.s32 %v192, %v709
    %v711 = vrot.slane %v618, %v710
    %v712 = vsel %vm197, %v711, %v707
    %v713 = vsel %vm238, %v712, %v673
    %v715 = vmax.f32 %v570, %v713
    %716 = vst.msk [vmem:[#allocation5] sm:$0x3] %vm242, %v715
    // Predicated region
    $region34: #{tpu_custom_call.1} parent=1 // pred_check
      %p717 = pneg %p38
    $region35: #{tpu_custom_call.1} parent=1 // pred_check_branch
      %719 = sbr.rel (%p717) target = $region37
    $region36: #{tpu_custom_call.1} parent=1 // pred_region
      %v720 = vld [vmem:[#allocation2] sm:$0x3]
      %v721 = vld [vmem:[#allocation3] sm:$0x3]
      %723 = vrot.lane.b32.xlu0 %v721, 64
      %v724 = vpop.permute.xlu0 %723
      %vm726 = vcmask 523264
      %v727 = vsel %vm726, %v720, %v724
      %v728 = vmul.f32 %v727, 0.00390625
      %v729 = vld [vmem:[#allocation4] sm:$0x3]
      %v730 = vld [vmem:[#allocation5] sm:$0x3]
      %732 = vrot.lane.b32.xlu0 %v730, 64
      %v733 = vpop.permute.xlu0 %732
      %v735 = vsel %vm726, %v729, %v733
      %v737 = vrot.slane %v735, 6
      %vm739 = vcmask 1041408
      %v740 = vsel %vm739, %v728, %v737
      %v741 = vld [vmem:[%s2] sm:$0xff]
      %v742 = vld [vmem:[%s2 + $0x8] sm:$0xff]
      %v743 = vld [vmem:[%s2 + $0x10] sm:$0xff]
      %v744 = vld [vmem:[%s2 + $0x18] sm:$0xff]
      %v745 = vld [vmem:[%s2 + $0x20] sm:$0xff]
      %v746 = vld [vmem:[%s2 + $0x28] sm:$0xff]
      %v747 = vld [vmem:[%s2 + $0x30] sm:$0xff]
      %v748 = vld [vmem:[%s2 + $0x38] sm:$0xff]
      %v749 = vld [vmem:[%s2 + $0x40] sm:$0xff]
      %v750 = vld [vmem:[%s2 + $0x48] sm:$0xff]
      %v751 = vld [vmem:[%s2 + $0x50] sm:$0xff]
      %v752 = vld [vmem:[%s2 + $0x58] sm:$0xff]
      %v753 = vld [vmem:[%s2 + $0x60] sm:$0xff]
      %v754 = vld [vmem:[%s2 + $0x68] sm:$0xff]
      %v755 = vld [vmem:[%s2 + $0x70] sm:$0xff]
      %v756 = vld [vmem:[%s2 + $0x78] sm:$0xff]
      %v757 = vld [vmem:[%s3] sm:$0x1]
      %v759 = vlaneseq
      %v760 = vshrl.u32 %v759, 7
      %v761 = vsub.s32 0, %v760
      %v762 = vrot.slane %v757, %v761
      %764 = vmatprep.subr.mxu0 0.0
      %765 = vmatpush1.msra.mxu0 %v741
      %766 = vmatprep.subr.mxu0 0.0
      %767 = vmatpush1.msra.mxu0 %v742
      %768 = vmatprep.subr.mxu0 0.0
      %769 = vmatpush1.msra.mxu0 %v743
      %770 = vmatprep.subr.mxu0 0.0
      %771 = vmatpush1.msra.mxu0 %v744
      %772 = vmatprep.subr.mxu0 0.0
      %773 = vmatpush1.msra.mxu0 %v745
      %774 = vmatprep.subr.mxu0 0.0
      %775 = vmatpush1.msra.mxu0 %v746
      %776 = vmatprep.subr.mxu0 0.0
      %777 = vmatpush1.msra.mxu0 %v747
      %778 = vmatprep.subr.mxu0 0.0
      %779 = vmatpush1.msra.mxu0 %v748
      %780 = vmatprep.subr.mxu0 0.0
      %781 = vmatpush1.msra.mxu0 %v749
      %782 = vmatprep.subr.mxu0 0.0
      %783 = vmatpush1.msra.mxu0 %v750
      %784 = vmatprep.subr.mxu0 0.0
      %785 = vmatpush1.msra.mxu0 %v751
      %786 = vmatprep.subr.mxu0 0.0
      %787 = vmatpush1.msra.mxu0 %v752
      %788 = vmatprep.subr.mxu0 0.0
      %789 = vmatpush1.msra.mxu0 %v753
      %790 = vmatprep.subr.mxu0 0.0
      %791 = vmatpush1.msra.mxu0 %v754
      %792 = vmatprep.subr.mxu0 0.0
      %793 = vmatpush1.msra.mxu0 %v755
      %794 = vmatprep.subr.mxu0 0.0
      %795 = vmatpush1.msra.mxu0 %v756
      %796 = vmatprep.subr.mxu0 0.0
      %797 = vmatpush1.msra.mxu0 0.0
      %798 = vmatprep.subr.mxu0 0.0
      %799 = vmatpush1.msra.mxu0 0.0
      %800 = vmatprep.subr.mxu0 0.0
      %801 = vmatpush1.msra.mxu0 0.0
      %802 = vmatprep.subr.mxu0 0.0
      %803 = vmatpush1.msra.mxu0 0.0
      %804 = vmatprep.subr.mxu0 0.0
      %805 = vmatpush1.msra.mxu0 0.0
      %806 = vmatprep.subr.mxu0 0.0
      %807 = vmatpush1.msra.mxu0 0.0
      %808 = vmatprep.subr.mxu0 0.0
      %809 = vmatpush1.msra.mxu0 0.0
      %810 = vmatprep.subr.mxu0 0.0
      %811 = vmatpush1.msra.mxu0 0.0
      %812 = vmatprep.subr.mxu0 0.0
      %813 = vmatpush1.msra.mxu0 0.0
      %814 = vmatprep.subr.mxu0 0.0
      %815 = vmatpush1.msra.mxu0 0.0
      %816 = vmatprep.subr.mxu0 0.0
      %817 = vmatpush1.msra.mxu0 0.0
      %818 = vmatprep.subr.mxu0 0.0
      %819 = vmatpush1.msra.mxu0 0.0
      %820 = vmatprep.subr.mxu0 0.0
      %821 = vmatpush1.msra.mxu0 0.0
      %822 = vmatprep.subr.mxu0 0.0
      %823 = vmatpush1.msra.mxu0 0.0
      %824 = vmatprep.subr.mxu0 0.0
      %825 = vmatpush1.msra.mxu0 0.0
      %826 = vmatprep.subr.mxu0 0.0
      %827 = vmatpush1.msra.mxu0 0.0
      %828 = vmatprep.mubr.f32.mxu0 0.0
      %829 = vmatmul.mubr.f32.gmra.mrb[0].mxu0 %v740
      %v830 = vpop.f32.mrb[0].mxu0
      %v831 = vadd.f32 %v762, %v830
      %v832 = vpop.f32.mrb[0].mxu0
      %833 = vdwg.mxu0
      %v834 = vmax.f32 %v831, 0.0
      %v835 = vld [vmem:[%s4] sm:$0xff]
      %v836 = vld [vmem:[%s5] sm:$0x1]
      %v838 = vlaneseq
      %v839 = vshrl.u32 %v838, 7
      %v840 = vsub.s32 0, %v839
      %v841 = vrot.slane %v836, %v840
      %vm843 = vcmask 64512
      %v845 = vsel %vm843, %v834, 0
      %847 = vmatprep.subr.mxu0 0.0
      %848 = vmatpush1.msra.mxu0 %v835
      %849 = vmatprep.subr.mxu0 0.0
      %850 = vmatpush1.msra.mxu0 0.0
      %851 = vmatprep.subr.mxu0 0.0
      %852 = vmatpush1.msra.mxu0 0.0
      %853 = vmatprep.subr.mxu0 0.0
      %854 = vmatpush1.msra.mxu0 0.0
      %855 = vmatprep.subr.mxu0 0.0
      %856 = vmatpush1.msra.mxu0 0.0
      %857 = vmatprep.subr.mxu0 0.0
      %858 = vmatpush1.msra.mxu0 0.0
      %859 = vmatprep.subr.mxu0 0.0
      %860 = vmatpush1.msra.mxu0 0.0
      %861 = vmatprep.subr.mxu0 0.0
      %862 = vmatpush1.msra.mxu0 0.0
      %863 = vmatprep.subr.mxu0 0.0
      %864 = vmatpush1.msra.mxu0 0.0
      %865 = vmatprep.subr.mxu0 0.0
      %866 = vmatpush1.msra.mxu0 0.0
      %867 = vmatprep.subr.mxu0 0.0
      %868 = vmatpush1.msra.mxu0 0.0
      %869 = vmatprep.subr.mxu0 0.0
      %870 = vmatpush1.msra.mxu0 0.0
      %871 = vmatprep.subr.mxu0 0.0
      %872 = vmatpush1.msra.mxu0 0.0
      %873 = vmatprep.subr.mxu0 0.0
      %874 = vmatpush1.msra.mxu0 0.0
      %875 = vmatprep.subr.mxu0 0.0
      %876 = vmatpush1.msra.mxu0 0.0
      %877 = vmatprep.subr.mxu0 0.0
      %878 = vmatpush1.msra.mxu0 0.0
      %879 = vmatprep.subr.mxu0 0.0
      %880 = vmatpush1.msra.mxu0 0.0
      %881 = vmatprep.subr.mxu0 0.0
      %882 = vmatpush1.msra.mxu0 0.0
      %883 = vmatprep.subr.mxu0 0.0
      %884 = vmatpush1.msra.mxu0 0.0
      %885 = vmatprep.subr.mxu0 0.0
      %886 = vmatpush1.msra.mxu0 0.0
      %887 = vmatprep.subr.mxu0 0.0
      %888 = vmatpush1.msra.mxu0 0.0
      %889 = vmatprep.subr.mxu0 0.0
      %890 = vmatpush1.msra.mxu0 0.0
      %891 = vmatprep.subr.mxu0 0.0
      %892 = vmatpush1.msra.mxu0 0.0
      %893 = vmatprep.subr.mxu0 0.0
      %894 = vmatpush1.msra.mxu0 0.0
      %895 = vmatprep.subr.mxu0 0.0
      %896 = vmatpush1.msra.mxu0 0.0
      %897 = vmatprep.subr.mxu0 0.0
      %898 = vmatpush1.msra.mxu0 0.0
      %899 = vmatprep.subr.mxu0 0.0
      %900 = vmatpush1.msra.mxu0 0.0
      %901 = vmatprep.subr.mxu0 0.0
      %902 = vmatpush1.msra.mxu0 0.0
      %903 = vmatprep.subr.mxu0 0.0
      %904 = vmatpush1.msra.mxu0 0.0
      %905 = vmatprep.subr.mxu0 0.0
      %906 = vmatpush1.msra.mxu0 0.0
      %907 = vmatprep.subr.mxu0 0.0
      %908 = vmatpush1.msra.mxu0 0.0
      %909 = vmatprep.subr.mxu0 0.0
      %910 = vmatpush1.msra.mxu0 0.0
      %911 = vmatprep.mubr.f32.mxu0 0.0
      %912 = vmatmul.mubr.f32.gmra.mrb[0].mxu0 %v845
      %v913 = vpop.f32.mrb[0].mxu0
      %v914 = vadd.f32 %v841, %v913
      %v915 = vpop.f32.mrb[0].mxu0
      %916 = vdwg.mxu0
      %v917 = vadd.f32 %v914, 0.0
      %v919 = vrot.slane %v914, 2
      %v921 = vadd.f32 %v917, %v919
      %v922 = vxor.u32 %v921, 2147483648
      %v923 = vmul.f32 %v922, 1.442695
      %v924 = vpow.pop %v923
      %v925 = vadd.f32 %v924, 1.0
      %v926 = vrcp.pop %v925
      %v927 = vmul.f32 1.0, %v926
      %s928 = scalar_lea.vmem %s2, 128
      %v929 = vld [vmem:[%s928] sm:$0xff]
      %v930 = vld [vmem:[%s928 + $0x8] sm:$0xff]
      %v931 = vld [vmem:[%s928 + $0x10] sm:$0xff]
      %v932 = vld [vmem:[%s928 + $0x18] sm:$0xff]
      %v933 = vld [vmem:[%s928 + $0x20] sm:$0xff]
      %v934 = vld [vmem:[%s928 + $0x28] sm:$0xff]
      %v935 = vld [vmem:[%s928 + $0x30] sm:$0xff]
      %v936 = vld [vmem:[%s928 + $0x38] sm:$0xff]
      %v937 = vld [vmem:[%s928 + $0x40] sm:$0xff]
      %v938 = vld [vmem:[%s928 + $0x48] sm:$0xff]
      %v939 = vld [vmem:[%s928 + $0x50] sm:$0xff]
      %v940 = vld [vmem:[%s928 + $0x58] sm:$0xff]
      %v941 = vld [vmem:[%s928 + $0x60] sm:$0xff]
      %v942 = vld [vmem:[%s928 + $0x68] sm:$0xff]
      %v943 = vld [vmem:[%s928 + $0x70] sm:$0xff]
      %v944 = vld [vmem:[%s928 + $0x78] sm:$0xff]
      %s945 = scalar_lea.vmem %s3, 1
      %v946 = vld [vmem:[%s945] sm:$0x1]
      %v948 = vlaneseq
      %v949 = vshrl.u32 %v948, 7
      %v950 = vsub.s32 0, %v949
      %v951 = vrot.slane %v946, %v950
      %953 = vmatprep.subr.mxu0 0.0
      %954 = vmatpush1.msra.mxu0 %v929
      %955 = vmatprep.subr.mxu0 0.0
      %956 = vmatpush1.msra.mxu0 %v930
      %957 = vmatprep.subr.mxu0 0.0
      %958 = vmatpush1.msra.mxu0 %v931
      %959 = vmatprep.subr.mxu0 0.0
      %960 = vmatpush1.msra.mxu0 %v932
      %961 = vmatprep.subr.mxu0 0.0
      %962 = vmatpush1.msra.mxu0 %v933
      %963 = vmatprep.subr.mxu0 0.0
      %964 = vmatpush1.msra.mxu0 %v934
      %965 = vmatprep.subr.mxu0 0.0
      %966 = vmatpush1.msra.mxu0 %v935
      %967 = vmatprep.subr.mxu0 0.0
      %968 = vmatpush1.msra.mxu0 %v936
      %969 = vmatprep.subr.mxu0 0.0
      %970 = vmatpush1.msra.mxu0 %v937
      %971 = vmatprep.subr.mxu0 0.0
      %972 = vmatpush1.msra.mxu0 %v938
      %973 = vmatprep.subr.mxu0 0.0
      %974 = vmatpush1.msra.mxu0 %v939
      %975 = vmatprep.subr.mxu0 0.0
      %976 = vmatpush1.msra.mxu0 %v940
      %977 = vmatprep.subr.mxu0 0.0
      %978 = vmatpush1.msra.mxu0 %v941
      %979 = vmatprep.subr.mxu0 0.0
      %980 = vmatpush1.msra.mxu0 %v942
      %981 = vmatprep.subr.mxu0 0.0
      %982 = vmatpush1.msra.mxu0 %v943
      %983 = vmatprep.subr.mxu0 0.0
      %984 = vmatpush1.msra.mxu0 %v944
      %985 = vmatprep.subr.mxu0 0.0
      %986 = vmatpush1.msra.mxu0 0.0
      %987 = vmatprep.subr.mxu0 0.0
      %988 = vmatpush1.msra.mxu0 0.0
      %989 = vmatprep.subr.mxu0 0.0
      %990 = vmatpush1.msra.mxu0 0.0
      %991 = vmatprep.subr.mxu0 0.0
      %992 = vmatpush1.msra.mxu0 0.0
      %993 = vmatprep.subr.mxu0 0.0
      %994 = vmatpush1.msra.mxu0 0.0
      %995 = vmatprep.subr.mxu0 0.0
      %996 = vmatpush1.msra.mxu0 0.0
      %997 = vmatprep.subr.mxu0 0.0
      %998 = vmatpush1.msra.mxu0 0.0
      %999 = vmatprep.subr.mxu0 0.0
      %1000 = vmatpush1.msra.mxu0 0.0
      %1001 = vmatprep.subr.mxu0 0.0
      %1002 = vmatpush1.msra.mxu0 0.0
      %1003 = vmatprep.subr.mxu0 0.0
      %1004 = vmatpush1.msra.mxu0 0.0
      %1005 = vmatprep.subr.mxu0 0.0
      %1006 = vmatpush1.msra.mxu0 0.0
      %1007 = vmatprep.subr.mxu0 0.0
      %1008 = vmatpush1.msra.mxu0 0.0
      %1009 = vmatprep.subr.mxu0 0.0
      %1010 = vmatpush1.msra.mxu0 0.0
      %1011 = vmatprep.subr.mxu0 0.0
      %1012 = vmatpush1.msra.mxu0 0.0
      %1013 = vmatprep.subr.mxu0 0.0
      %1014 = vmatpush1.msra.mxu0 0.0
      %1015 = vmatprep.subr.mxu0 0.0
      %1016 = vmatpush1.msra.mxu0 0.0
      %1017 = vmatprep.mubr.f32.mxu0 0.0
      %1018 = vmatmul.mubr.f32.gmra.mrb[0].mxu0 %v740
      %v1019 = vpop.f32.mrb[0].mxu0
      %v1020 = vadd.f32 %v951, %v1019
      %v1021 = vpop.f32.mrb[0].mxu0
      %1022 = vdwg.mxu0
      %v1023 = vmax.f32 %v1020, 0.0
      %s1024 = scalar_lea.vmem %s4, 8
      %v1025 = vld [vmem:[%s1024] sm:$0xff]
      %s1026 = scalar_lea.vmem %s5, 1
      %v1027 = vld [vmem:[%s1026] sm:$0x1]
      %v1029 = vlaneseq
      %v1030 = vshrl.u32 %v1029, 7
      %v1031 = vsub.s32 0, %v1030
      %v1032 = vrot.slane %v1027, %v1031
      %v1035 = vsel %vm843, %v1023, 0
      %1037 = vmatprep.subr.mxu0 0.0
      %1038 = vmatpush1.msra.mxu0 %v1025
      %1039 = vmatprep.subr.mxu0 0.0
      %1040 = vmatpush1.msra.mxu0 0.0
      %1041 = vmatprep.subr.mxu0 0.0
      %1042 = vmatpush1.msra.mxu0 0.0
      %1043 = vmatprep.subr.mxu0 0.0
      %1044 = vmatpush1.msra.mxu0 0.0
      %1045 = vmatprep.subr.mxu0 0.0
      %1046 = vmatpush1.msra.mxu0 0.0
      %1047 = vmatprep.subr.mxu0 0.0
      %1048 = vmatpush1.msra.mxu0 0.0
      %1049 = vmatprep.subr.mxu0 0.0
      %1050 = vmatpush1.msra.mxu0 0.0
      %1051 = vmatprep.subr.mxu0 0.0
      %1052 = vmatpush1.msra.mxu0 0.0
      %1053 = vmatprep.subr.mxu0 0.0
      %1054 = vmatpush1.msra.mxu0 0.0
      %1055 = vmatprep.subr.mxu0 0.0
      %1056 = vmatpush1.msra.mxu0 0.0
      %1057 = vmatprep.subr.mxu0 0.0
      %1058 = vmatpush1.msra.mxu0 0.0
      %1059 = vmatprep.subr.mxu0 0.0
      %1060 = vmatpush1.msra.mxu0 0.0
      %1061 = vmatprep.subr.mxu0 0.0
      %1062 = vmatpush1.msra.mxu0 0.0
      %1063 = vmatprep.subr.mxu0 0.0
      %1064 = vmatpush1.msra.mxu0 0.0
      %1065 = vmatprep.subr.mxu0 0.0
      %1066 = vmatpush1.msra.mxu0 0.0
      %1067 = vmatprep.subr.mxu0 0.0
      %1068 = vmatpush1.msra.mxu0 0.0
      %1069 = vmatprep.subr.mxu0 0.0
      %1070 = vmatpush1.msra.mxu0 0.0
      %1071 = vmatprep.subr.mxu0 0.0
      %1072 = vmatpush1.msra.mxu0 0.0
      %1073 = vmatprep.subr.mxu0 0.0
      %1074 = vmatpush1.msra.mxu0 0.0
      %1075 = vmatprep.subr.mxu0 0.0
      %1076 = vmatpush1.msra.mxu0 0.0
      %1077 = vmatprep.subr.mxu0 0.0
      %1078 = vmatpush1.msra.mxu0 0.0
      %1079 = vmatprep.subr.mxu0 0.0
      %1080 = vmatpush1.msra.mxu0 0.0
      %1081 = vmatprep.subr.mxu0 0.0
      %1082 = vmatpush1.msra.mxu0 0.0
      %1083 = vmatprep.subr.mxu0 0.0
      %1084 = vmatpush1.msra.mxu0 0.0
      %1085 = vmatprep.subr.mxu0 0.0
      %1086 = vmatpush1.msra.mxu0 0.0
      %1087 = vmatprep.subr.mxu0 0.0
      %1088 = vmatpush1.msra.mxu0 0.0
      %1089 = vmatprep.subr.mxu0 0.0
      %1090 = vmatpush1.msra.mxu0 0.0
      %1091 = vmatprep.subr.mxu0 0.0
      %1092 = vmatpush1.msra.mxu0 0.0
      %1093 = vmatprep.subr.mxu0 0.0
      %1094 = vmatpush1.msra.mxu0 0.0
      %1095 = vmatprep.subr.mxu0 0.0
      %1096 = vmatpush1.msra.mxu0 0.0
      %1097 = vmatprep.subr.mxu0 0.0
      %1098 = vmatpush1.msra.mxu0 0.0
      %1099 = vmatprep.subr.mxu0 0.0
      %1100 = vmatpush1.msra.mxu0 0.0
      %1101 = vmatprep.mubr.f32.mxu0 0.0
      %1102 = vmatmul.mubr.f32.gmra.mrb[0].mxu0 %v1035
      %v1103 = vpop.f32.mrb[0].mxu0
      %v1104 = vadd.f32 %v1032, %v1103
      %v1105 = vpop.f32.mrb[0].mxu0
      %1106 = vdwg.mxu0
      %v1107 = vadd.f32 %v921, %v1104
      %v1109 = vrot.slane %v1104, 2
      %v1111 = vadd.f32 %v1107, %v1109
      %v1112 = vxor.u32 %v1111, 2147483648
      %v1113 = vmul.f32 %v1112, 1.442695
      %v1114 = vpow.pop %v1113
      %v1115 = vadd.f32 %v1114, 1.0
      %v1116 = vrcp.pop %v1115
      %v1117 = vmul.f32 1.0, %v1116
      %1119 = vrot.lane.b32.xlu0 %v1117, 64
      %v1120 = vpop.permute.xlu0 %1119
      %v1122 = vsel %vm726, %v927, %v1120
      %1123 = vst [vmem:[#allocation9] sm:$0x3] %v1122
    $region37: #{tpu_custom_call.1} parent=1 // pred_fallthru
      _
    // Predicated region
    $region38: #{tpu_custom_call.1} parent=1 // pred_check
      _
    $region39: #{tpu_custom_call.1} parent=1 // pred_check_branch
      %1125 = sbr.rel (0) target = $region41
    $region40: #{tpu_custom_call.1} parent=1 // pred_region
      %s1127 = ssub.s32 32, 32
      %1128 = vsyncadd [#allocation8], %s1127
      %s1130 = sshll.u32 [#allocation9], 4
      %s1131 = int_to_ptr.vmem [resolvable:$true] %s1130
      %1133 = dma.vmem_to_hbm [thread:$0]  %s1131, 32, %s6, [#allocation8]
    $region41: #{tpu_custom_call.1} parent=1 // pred_fallthru
      _
    // Predicated region
    $region42: #{tpu_custom_call.1} parent=1 // pred_check
      _
    $region43: #{tpu_custom_call.1} parent=1 // pred_check_branch
      %1135 = sbr.rel (0) target = $region45
    $region44: #{tpu_custom_call.1} parent=1 // pred_region
      %1136 = dma.done [#allocation8], 32
    $region45: #{tpu_custom_call.1} parent=1 // pred_fallthru
      _
    %1137 = vsyncpa [#allocation7], 1
    %1138 = vsyncpa [#allocation8], 1

</llo_original>
